<compile_context>
chip_gen: v5e
topology: v5e:2x2
jax: 0.10.0
libtpu: 0.0.40
codegen_flags: <defaults>
</compile_context>

<pallas_src>
import functools

import jax
import jax.numpy as jnp
from jax.experimental import pallas as pl
from jax.experimental.pallas import tpu as pltpu

_NEG_BIG = -1e30  # score for padded codebook rows -> never selected


def _round_up(v, m):
    return (v + m - 1) // m * m


def _vq_kernel(x_ref, emb_ref, bias_ref, codes_ref, q_ref):
    """One M-tile of nearest-centroid search + centroid gather.

    x_ref:     [TM, Dp]   input rows (native dtype; upcast here)
    emb_ref:   [Kp, Dp]   codebook centroids, f32 (grid-resident)
    bias_ref:  [1,  Kp]   -0.5 * ||e||^2, padded rows = -1e30 (grid-resident)
    codes_ref: [1, 1, TM] int32 nearest-code indices (lane-dense)
    q_ref:     [TM, Dp]   gathered centroids (f32)
    """
    x = x_ref[...].astype(jnp.float32)      # [TM, Dp]
    e = emb_ref[...]                        # [Kp, Dp] f32

    # argmax(x.e^T - 0.5||e||^2) == argmin(||x - e||^2); the per-row ||x||^2
    # constant is dropped, and the 0.5/||e||^2 folding is done once in the
    # wrapper, so this is one MXU matmul + one broadcast-add per tile.
    # (Kept in f32 to match torch.cdist argmin exactly; bf16 would be faster
    #  on v6e/v7x but can flip near-tie codes.)
    score = jnp.dot(x, e.T, preferred_element_type=jnp.float32) + bias_ref[...]
    codes = jnp.argmax(score, axis=-1).astype(jnp.int32)          # [TM]
    codes_ref[...] = codes[None, None, :]                         # lane-dense

    # Gather centroids as one-hot @ embedding (MXU), == F.embedding(codes, e).
    onehot = (jax.lax.broadcasted_iota(jnp.int32, score.shape, 1)
              == codes[:, None]).astype(jnp.float32)              # [TM, Kp]
    q = jnp.dot(onehot, e, preferred_element_type=jnp.float32)    # [TM, Dp]
    q_ref[...] = q


@jax.jit
def vector_quantization_forward(x, embedding_sum, cluster_usage, epsilon=1e-5):
    """Eval-mode forward of VectorQuantization.

    x:             [B, D, N]  float input (PyTorch 'b d n' layout)
    embedding_sum: [K, D]
    cluster_usage: [K]
    Returns (quantized [B, D, N] f32, codes [B, N] int32, loss scalar, metrics {}).
    """
    B, D, N = x.shape
    K = embedding_sum.shape[0]
    M = B * N

    # embedding = embedding_sum / cluster_usage.clamp(min=eps)[:, None]
    embedding = (embedding_sum.astype(jnp.float32)
                 / jnp.maximum(cluster_usage.astype(jnp.float32), epsilon)[:, None])

    # b d n -> b n d -> (b n) d   (keep native dtype; upcast inside kernel)
    x_flat = jnp.transpose(x, (0, 2, 1)).reshape(M, D)

    # Lane/MXU-friendly padding and M tiling.
    Dp = _round_up(D, 128)
    Kp = _round_up(K, 128)
    TM = 512 if M >= 512 else _round_up(M, 8)   # multiple of 8 (and 128 when large)
    Mp = _round_up(M, TM)
    num_tiles = Mp // TM

    x_p = jnp.zeros((Mp, Dp), x_flat.dtype).at[:M, :D].set(x_flat)
    emb_p = jnp.zeros((Kp, Dp), jnp.float32).at[:K, :D].set(embedding)
    # Pre-fold -0.5*||e||^2 once (computed in the wrapper, not per grid step);
    # padded codebook rows get a huge negative score so argmax never picks them.
    bias = jnp.full((1, Kp), _NEG_BIG, jnp.float32).at[0, :K].set(
        -0.5 * jnp.sum(embedding * embedding, axis=-1))

    flops = 2 * 2 * Mp * Kp * Dp                           # two matmuls
    bytes_accessed = 4 * (2 * Mp * Dp + Kp * Dp + Kp + Mp)  # x in, q out, codebook, codes

    codes_t, q_p = pl.pallas_call(
        _vq_kernel,
        out_shape=(
            jax.ShapeDtypeStruct((num_tiles, 1, TM), jnp.int32),
            jax.ShapeDtypeStruct((Mp, Dp), jnp.float32),
        ),
        grid_spec=pltpu.PrefetchScalarGridSpec(
            num_scalar_prefetch=0,
            grid=(num_tiles,),
            in_specs=[
                pl.BlockSpec((TM, Dp), lambda i: (i, 0)),   # x tile, pipelined
                pl.BlockSpec((Kp, Dp), lambda i: (0, 0)),   # codebook, resident
                pl.BlockSpec((1, Kp), lambda i: (0, 0)),    # folded bias, resident
            ],
            out_specs=(
                pl.BlockSpec((1, 1, TM), lambda i: (i, 0, 0)),  # lane-dense codes
                pl.BlockSpec((TM, Dp), lambda i: (i, 0)),
            ),
        ),
        compiler_params=pltpu.CompilerParams(
            dimension_semantics=("parallel",)),             # shard M-tiles across TCs
        cost_estimate=pl.CostEstimate(
            flops=flops, transcendentals=0, bytes_accessed=bytes_accessed),
    )(x_p, emb_p, bias)

    codes = codes_t.reshape(Mp)[:M].reshape(B, N)            # [B, N] int32
    quantized = q_p[:M, :D].reshape(B, N, D)                 # [B, N, D] f32
    quantized = jnp.transpose(quantized, (0, 2, 1))          # b n d -> b d n
    loss = jnp.zeros((), dtype=jnp.float32)                  # eval: zero_scalar
    metrics = {}
    return quantized, codes, loss, metrics


if __name__ == "__main__":
    # Small, module-consistent shapes: dim=32, codebook_size=64, batch=2, seq=16.
    B, D, N, K = 2, 32, 16, 64
    key = jax.random.PRNGKey(0)
    kx, ke = jax.random.split(key)

    x = jax.random.normal(kx, (B, D, N), dtype=jnp.float32)
    # Deterministic synthetic codebook buffers (shapes from EuclideanCodebook.__init__).
    embedding_sum = jax.random.normal(ke, (K, D), dtype=jnp.float32)
    cluster_usage = jnp.ones((K,), dtype=jnp.float32)

    quantized, codes, loss, metrics = vector_quantization_forward(
        x, embedding_sum, cluster_usage)
    jax.block_until_ready((quantized, codes, loss))

    # Lightweight pure-JAX reference check (full squared-distance formulation).
    emb = embedding_sum / jnp.maximum(cluster_usage, 1e-5)[:, None]
    xf = jnp.transpose(x, (0, 2, 1)).reshape(-1, D)
    d2 = (jnp.sum(xf ** 2, -1, keepdims=True)
          - 2.0 * xf @ emb.T
          + jnp.sum(emb ** 2, -1)[None, :])
    ref_codes = jnp.argmin(d2, axis=-1).astype(jnp.int32).reshape(B, N)
    ref_q = jnp.transpose(emb[ref_codes.reshape(-1)].reshape(B, N, D), (0, 2, 1))

    assert quantized.shape == (B, D, N) and codes.shape == (B, N)
    assert jnp.array_equal(codes, ref_codes), "codes mismatch"
    assert jnp.allclose(quantized, ref_q, atol=1e-5), "quantized mismatch"
    assert float(loss) == 0.0

    print("KERNEL_OK")
</pallas_src>

<mosaic_0001>
module attributes {stable_mosaic.version = 11 : i64} {
  func.func @_vq_kernel(%arg0: i32, %arg1: memref<32x128xf32, #tpu.memory_space<vmem>>, %arg2: memref<128x128xf32, #tpu.memory_space<vmem>>, %arg3: memref<1x128xf32, #tpu.memory_space<vmem>>, %arg4: memref<1x1x32xi32, #tpu.memory_space<vmem>>, %arg5: memref<32x128xf32, #tpu.memory_space<vmem>>) attributes {dimension_semantics = [#tpu.dimension_semantics<parallel>], iteration_bounds = array<i64: 1>, scalar_prefetch = 0 : i64, scratch_operands = 0 : i64, tpu.core_type = #tpu.core_type<tc>, window_params = [{transform_indices = @transform_0, window_bounds = array<i64: 32, 128>}, {pipeline_mode = #tpu.pipeline_mode<synchronous>, transform_indices = @transform_1, window_bounds = array<i64: 128, 128>}, {pipeline_mode = #tpu.pipeline_mode<synchronous>, transform_indices = @transform_2, window_bounds = array<i64: 1, 128>}, {transform_indices = @transform_3, window_bounds = array<i64: 1, 1, 32>}, {transform_indices = @transform_4, window_bounds = array<i64: 32, 128>}]} {
    %c0 = arith.constant 0 : index
    %c0_0 = arith.constant 0 : index
    %0 = vector.load %arg1[%c0, %c0_0] : memref<32x128xf32, #tpu.memory_space<vmem>>, vector<32x128xf32>
    %c0_1 = arith.constant 0 : index
    %c0_2 = arith.constant 0 : index
    %1 = vector.load %arg2[%c0_1, %c0_2] : memref<128x128xf32, #tpu.memory_space<vmem>>, vector<128x128xf32>
    %2 = tpu.transpose %1, [1, 0] : vector<128x128xf32> -> vector<128x128xf32>
    %cst = arith.constant dense<0.000000e+00> : vector<32x128xf32>
    %3 = tpu.matmul %0, %2, %cst {dimension_numbers = #tpu.dot_dimension_numbers<[1], [0], [0], [1], [0, 0, 1, 1], [], []>} : vector<32x128xf32>, vector<128x128xf32>, vector<32x128xf32> -> vector<32x128xf32>
    %c0_3 = arith.constant 0 : index
    %c0_4 = arith.constant 0 : index
    %4 = vector.load %arg3[%c0_3, %c0_4] : memref<1x128xf32, #tpu.memory_space<vmem>>, vector<1x128xf32>
    %5 = vector.broadcast %4 : vector<1x128xf32> to vector<32x128xf32>
    %6 = arith.addf %3, %5 : vector<32x128xf32>
    %7 = tpu.reduce_index %6 {axis = 1 : i32, kind = #tpu.reduction_kind<arg_max>} : vector<32x128xf32> -> vector<32xi32>
    %8 = vector.shape_cast %7 : vector<32xi32> to vector<1x1x32xi32>
    %c0_5 = arith.constant 0 : index
    %c0_6 = arith.constant 0 : index
    %c0_7 = arith.constant 0 : index
    %9 = vector.load %arg4[%c0_5, %c0_6, %c0_7] : memref<1x1x32xi32, #tpu.memory_space<vmem>>, vector<1x1x32xi32>
    tpu.vector_store %arg4[%c0_5, %c0_6, %c0_7], %8 {strides = array<i32>} : memref<1x1x32xi32, #tpu.memory_space<vmem>>, vector<1x1x32xi32>,
    %10 = tpu.iota {dimensions = array<i32: 1>} : vector<32x128xi32>
    %11 = vector.shape_cast %7 : vector<32xi32> to vector<32x1xi32>
    %12 = vector.broadcast %11 : vector<32x1xi32> to vector<32x128xi32>
    %13 = arith.cmpi eq, %10, %12 : vector<32x128xi32>
    %14 = arith.extui %13 : vector<32x128xi1> to vector<32x128xi32>
    %15 = arith.sitofp %14 : vector<32x128xi32> to vector<32x128xf32>
    %cst_8 = arith.constant dense<0.000000e+00> : vector<32x128xf32>
    %16 = tpu.matmul %15, %1, %cst_8 {dimension_numbers = #tpu.dot_dimension_numbers<[1], [0], [0], [1], [0, 0, 1, 1], [], []>} : vector<32x128xf32>, vector<128x128xf32>, vector<32x128xf32> -> vector<32x128xf32>
    %c0_9 = arith.constant 0 : index
    %c0_10 = arith.constant 0 : index
    %17 = vector.load %arg5[%c0_9, %c0_10] : memref<32x128xf32, #tpu.memory_space<vmem>>, vector<32x128xf32>
    tpu.vector_store %arg5[%c0_9, %c0_10], %16 {strides = array<i32>} : memref<32x128xf32, #tpu.memory_space<vmem>>, vector<32x128xf32>,
    return
  }
  func.func @transform_0(%arg0: i32) -> (i32, i32) {
    %c0_i32 = arith.constant 0 : i32
    %c0_i32_0 = arith.constant 0 : i32
    return %arg0, %c0_i32 : i32, i32
  }
  func.func @transform_1(%arg0: i32) -> (i32, i32) {
    %c0_i32 = arith.constant 0 : i32
    %c0_i32_0 = arith.constant 0 : i32
    %c0_i32_1 = arith.constant 0 : i32
    return %c0_i32, %c0_i32_0 : i32, i32
  }
  func.func @transform_2(%arg0: i32) -> (i32, i32) {
    %c0_i32 = arith.constant 0 : i32
    %c0_i32_0 = arith.constant 0 : i32
    %c0_i32_1 = arith.constant 0 : i32
    return %c0_i32, %c0_i32_0 : i32, i32
  }
  func.func @transform_3(%arg0: i32) -> (i32, i32, i32) {
    %c0_i32 = arith.constant 0 : i32
    %c0_i32_0 = arith.constant 0 : i32
    %c0_i32_1 = arith.constant 0 : i32
    return %arg0, %c0_i32, %c0_i32_0 : i32, i32, i32
  }
  func.func @transform_4(%arg0: i32) -> (i32, i32) {
    %c0_i32 = arith.constant 0 : i32
    %c0_i32_0 = arith.constant 0 : i32
    return %arg0, %c0_i32 : i32, i32
  }
}

</mosaic_0001>

<llo_original>
// kernel: vector_quantization_forward.1
$region0: #{vector_quantization_forward.1}
  #allocation0 [shape = 'u32[]', space=smem, size = 0x4, offset = 0x4, fixed_abs, tag = 'smem constant byte address 0x4 - core index']
  #allocation1 [shape = 'u32[72,128]{1,0:T(1,128)}', space=vmem, size = 0x9000, scoped, tag = 'internal scratch']
  %s0 = inlined_call_operand.vmem [shape: f32[32,128], index: 0, kind: input, shape index: {}]
  %s1 = inlined_call_operand.vmem [shape: f32[128,128], index: 1, kind: input, shape index: {}]
  %s2 = inlined_call_operand.vmem [shape: f32[1,128], index: 2, kind: input, shape index: {}]
  %s3 = inlined_call_operand.vmem [shape: s32[1,1,32], index: 3, kind: output, shape index: {0}]
  %s4 = inlined_call_operand.hbm [shape: f32[32,128], index: 4, kind: output, shape index: {1}]
  %5 = xla_tuple %s3, %s4
  %s6 = sld [smem:[#allocation0]]
  $region30: #{vector_quantization_forward.1} parent=0
    _
  %s8 = ssub.s32 1, %s6
  %s9 = scalar_select 0, %s8, %s6
  $region1: #{vector_quantization_forward.1} parent=0
    #allocation2 [shape = 'u8[16384]{0}', space=vmem, size = 0x4000, scoped, tag = 'output window, operand 1, single buffered']
    #allocation3 [shape = 's32[1]{0}', space=sflag, size = 0x4, scoped, tag = 'scoped memory for vector_quantization_forward.1']
    %10 = vsyncpa [#allocation3], 0
    // Predicated region
    $region2: #{vector_quantization_forward.1} parent=1 // pred_check
      _
    $region3: #{vector_quantization_forward.1} parent=1 // pred_check_branch
      %12 = sbr.rel (0) target = $region5
    $region4: #{vector_quantization_forward.1} parent=1 // pred_region
      _
    $region5: #{vector_quantization_forward.1} parent=1 // pred_fallthru
      _
    // Predicated region
    $region6: #{vector_quantization_forward.1} parent=1 // pred_check
      _
    $region7: #{vector_quantization_forward.1} parent=1 // pred_check_branch
      %14 = sbr.rel (0) target = $region9
    $region8: #{vector_quantization_forward.1} parent=1 // pred_region
      _
    $region9: #{vector_quantization_forward.1} parent=1 // pred_fallthru
      _
    // Predicated region
    $region10: #{vector_quantization_forward.1} parent=1 // pred_check
      _
    $region11: #{vector_quantization_forward.1} parent=1 // pred_check_branch
      %16 = sbr.rel (0) target = $region13
    $region12: #{vector_quantization_forward.1} parent=1 // pred_region
      _
    $region13: #{vector_quantization_forward.1} parent=1 // pred_fallthru
      _
    %v17 = vld [vmem:[%s0] sm:$0xff]
    %v18 = vld [vmem:[%s0 + $0x8] sm:$0xff]
    %v19 = vld [vmem:[%s0 + $0x10] sm:$0xff]
    %v20 = vld [vmem:[%s0 + $0x18] sm:$0xff]
    %v21 = vld [vmem:[%s1] sm:$0xff]
    %v22 = vld [vmem:[%s1 + $0x8] sm:$0xff]
    %v23 = vld [vmem:[%s1 + $0x10] sm:$0xff]
    %v24 = vld [vmem:[%s1 + $0x18] sm:$0xff]
    %v25 = vld [vmem:[%s1 + $0x20] sm:$0xff]
    %v26 = vld [vmem:[%s1 + $0x28] sm:$0xff]
    %v27 = vld [vmem:[%s1 + $0x30] sm:$0xff]
    %v28 = vld [vmem:[%s1 + $0x38] sm:$0xff]
    %v29 = vld [vmem:[%s1 + $0x40] sm:$0xff]
    %v30 = vld [vmem:[%s1 + $0x48] sm:$0xff]
    %v31 = vld [vmem:[%s1 + $0x50] sm:$0xff]
    %v32 = vld [vmem:[%s1 + $0x58] sm:$0xff]
    %v33 = vld [vmem:[%s1 + $0x60] sm:$0xff]
    %v34 = vld [vmem:[%s1 + $0x68] sm:$0xff]
    %v35 = vld [vmem:[%s1 + $0x70] sm:$0xff]
    %v36 = vld [vmem:[%s1 + $0x78] sm:$0xff]
    %v37 = vld [vmem:[%s2] sm:$0x1]
    %v39 = vperm.slane %v37, 0
    %41 = vmatpush.xpose.msra.mxu0 %v36
    %42 = vmatpush.xpose.msra.mxu0 %v35
    %43 = vmatpush.xpose.msra.mxu0 %v34
    %44 = vmatpush.xpose.msra.mxu0 %v33
    %45 = vmatpush.xpose.msra.mxu0 %v32
    %46 = vmatpush.xpose.msra.mxu0 %v31
    %47 = vmatpush.xpose.msra.mxu0 %v30
    %48 = vmatpush.xpose.msra.mxu0 %v29
    %49 = vmatpush.xpose.msra.mxu0 %v28
    %50 = vmatpush.xpose.msra.mxu0 %v27
    %51 = vmatpush.xpose.msra.mxu0 %v26
    %52 = vmatpush.xpose.msra.mxu0 %v25
    %53 = vmatpush.xpose.msra.mxu0 %v24
    %54 = vmatpush.xpose.msra.mxu0 %v23
    %55 = vmatpush.xpose.msra.mxu0 %v22
    %56 = vmatpush.xpose.msra.mxu0 %v21
    %57 = vmatmul.f32.gmra.mxu0 %v17
    %v58 = vpop.f32.mrf.mxu0
    %v59 = vadd.f32 %v39, %v58
    %60 = vmatmul.f32.gmra.mxu0 %v18
    %v61 = vpop.f32.mrf.mxu0
    %v62 = vadd.f32 %v39, %v61
    %63 = vmatmul.f32.gmra.mxu0 %v19
    %v64 = vpop.f32.mrf.mxu0
    %v65 = vadd.f32 %v39, %v64
    %66 = vmatmul.f32.gmra.mxu0 %v20
    %v67 = vpop.f32.mrf.mxu0
    %v68 = vadd.f32 %v39, %v67
    %69 = vdwg.mxu0
    %70 = vmax.index.xlane.f32.xlu0 %v59
    %v71 = vpop.xlane.xlu0 %70
    %72 = vmax.index.xlane.f32.xlu0 %v62
    %v73 = vpop.xlane.xlu0 %72
    %74 = vmax.index.xlane.f32.xlu0 %v65
    %v75 = vpop.xlane.xlu0 %74
    %76 = vmax.index.xlane.f32.xlu0 %v68
    %v77 = vpop.xlane.xlu0 %76
    %v78 = vlaneseq
    %v79 = vand.u32 %v78, 127
    %v80 = vperm.slane %v71, %v79
    %v81 = vadd.s32 %v79, 4294967288
    %v82 = vperm.slane %v73, %v81
    %vm83 = vcmask 130112
    %v84 = vsel %vm83, %v82, %v80
    %v85 = vadd.s32 %v79, 4294967280
    %v86 = vperm.slane %v75, %v85
    %vm87 = vcmask 195712
    %v88 = vsel %vm87, %v86, %v84
    %v89 = vadd.s32 %v79, 4294967272
    %v90 = vperm.slane %v77, %v89
    %vm91 = vcmask 261312
    %v92 = vsel %vm91, %v90, %v88
    %vm93 = vcmask 253952
    %94 = vst.msk [vmem:[%s3] sm:$0x1] %vm93, %v92
    %vm95 = vcmp.eq.s32.totalorder %v79, %v71
    %vm96 = vcmp.eq.s32.totalorder %v79, %v73
    %vm97 = vcmp.eq.s32.totalorder %v79, %v75
    %vm98 = vcmp.eq.s32.totalorder %v79, %v77
    %v99 = vsel %vm95, 1, 0
    %v100 = vsel %vm96, 1, 0
    %v101 = vsel %vm97, 1, 0
    %v102 = vsel %vm98, 1, 0
    %v103 = vcvt.s32.f32 %v99
    %v104 = vcvt.s32.f32 %v100
    %v105 = vcvt.s32.f32 %v101
    %v106 = vcvt.s32.f32 %v102
    %107 = vmatpush.msra.mxu0 %v36
    %108 = vmatpush.msra.mxu0 %v35
    %109 = vmatpush.msra.mxu0 %v34
    %110 = vmatpush.msra.mxu0 %v33
    %111 = vmatpush.msra.mxu0 %v32
    %112 = vmatpush.msra.mxu0 %v31
    %113 = vmatpush.msra.mxu0 %v30
    %114 = vmatpush.msra.mxu0 %v29
    %115 = vmatpush.msra.mxu0 %v28
    %116 = vmatpush.msra.mxu0 %v27
    %117 = vmatpush.msra.mxu0 %v26
    %118 = vmatpush.msra.mxu0 %v25
    %119 = vmatpush.msra.mxu0 %v24
    %120 = vmatpush.msra.mxu0 %v23
    %121 = vmatpush.msra.mxu0 %v22
    %122 = vmatpush.msra.mxu0 %v21
    %123 = vmatmul.f32.gmra.mxu0 %v103
    %v124 = vpop.f32.mrf.mxu0
    %v125 = vadd.f32 0.0, %v124
    %126 = vmatmul.f32.gmra.mxu0 %v104
    %v127 = vpop.f32.mrf.mxu0
    %v128 = vadd.f32 0.0, %v127
    %129 = vmatmul.f32.gmra.mxu0 %v105
    %v130 = vpop.f32.mrf.mxu0
    %v131 = vadd.f32 0.0, %v130
    %132 = vmatmul.f32.gmra.mxu0 %v106
    %v133 = vpop.f32.mrf.mxu0
    %v134 = vadd.f32 0.0, %v133
    %135 = vdwg.mxu0
    %136 = vst [vmem:[#allocation2] sm:$0xff] %v125
    %137 = vst [vmem:[#allocation2 + $0x8] sm:$0xff] %v128
    %138 = vst [vmem:[#allocation2 + $0x10] sm:$0xff] %v131
    %139 = vst [vmem:[#allocation2 + $0x18] sm:$0xff] %v134
    // Predicated region
    $region14: #{vector_quantization_forward.1} parent=1 // pred_check
      _
    $region15: #{vector_quantization_forward.1} parent=1 // pred_check_branch
      %141 = sbr.rel (0) target = $region17
    $region16: #{vector_quantization_forward.1} parent=1 // pred_region
      _
    $region17: #{vector_quantization_forward.1} parent=1 // pred_fallthru
      _
    // Predicated region
    $region18: #{vector_quantization_forward.1} parent=1 // pred_check
      _
    $region19: #{vector_quantization_forward.1} parent=1 // pred_check_branch
      %143 = sbr.rel (0) target = $region21
    $region20: #{vector_quantization_forward.1} parent=1 // pred_region
      %145 = vsyncadd [#allocation3], 0
      %s146 = sshll.u32 [#allocation2], 4
      %s147 = int_to_ptr.vmem [resolvable:$true] %s146
      %s148 = sshll.u32 %s4, 4
      %s149 = int_to_ptr.hbm [resolvable:$true] %s148
      %154 = dma.vmem_to_hbm [thread:$0]  %s147, 512, %s149, [#allocation3], 128, 128, 8
    $region21: #{vector_quantization_forward.1} parent=1 // pred_fallthru
      _
    // Predicated region
    $region22: #{vector_quantization_forward.1} parent=1 // pred_check
      _
    $region23: #{vector_quantization_forward.1} parent=1 // pred_check_branch
      %156 = sbr.rel (0) target = $region25
    $region24: #{vector_quantization_forward.1} parent=1 // pred_region
      _
    $region25: #{vector_quantization_forward.1} parent=1 // pred_fallthru
      _
    // Predicated region
    $region26: #{vector_quantization_forward.1} parent=1 // pred_check
      _
    $region27: #{vector_quantization_forward.1} parent=1 // pred_check_branch
      %158 = sbr.rel (0) target = $region29
    $region28: #{vector_quantization_forward.1} parent=1 // pred_region
      %160 = dma.done [#allocation3], 512
    $region29: #{vector_quantization_forward.1} parent=1 // pred_fallthru
      _
    %161 = vsyncpa [#allocation3], 1

</llo_original>
